<compile_context>
chip_gen: v7x
topology: tpu7x:2x2x1
jax: 0.10.0
libtpu: 0.0.40
codegen_flags: <defaults>
</compile_context>

<pallas_src>
import math

import jax
import jax.numpy as jnp
from jax.experimental import pallas as pl
from jax.experimental.pallas import tpu as pltpu

_SQRT3 = math.sqrt(3.0)


def _embedding_kernel(tbl_ref, idx_ref, out_ref):
    # tbl_ref: (V, D) = (2, 3) f32 in SMEM -- scalar reads.
    # idx_ref: (TM, L) int32 in VMEM       -- lane-dense index tile.
    # out_ref: (D, TM, L) f32 in VMEM      -- lane-dense, unmasked stores.
    is_row0 = idx_ref[...] == 0                      # (TM, L) VPU compare
    for di in range(out_ref.shape[0]):               # D == 3, unrolled
        r0 = tbl_ref[0, di] * _SQRT3                 # scalar load + scalar mul
        r1 = tbl_ref[1, di] * _SQRT3
        # scalar -> vreg splat + select; pure VALU, no MXU / XLU.
        out_ref[di, :, :] = jnp.where(is_row0, r0, r1).astype(out_ref.dtype)


def embedding_forward(x, table, *, tile_elems=131072, lanes=512):
    """x: int array (values in [0, 2)), table: (2, 3) f32. Returns table[x]*sqrt(3)."""
    assert lanes % 128 == 0, "lane width must be a multiple of 128"
    v, d = table.shape
    orig_shape = x.shape

    flat = x.reshape(-1).astype(jnp.int32)
    n = flat.shape[0]
    if n == 0:                                   # zero-length edge case
        return jnp.zeros((*orig_shape, d), table.dtype)

    L = lanes
    n_rows = pl.cdiv(n, L)
    n_pad = n_rows * L
    if n_pad != n:
        flat = jnp.pad(flat, (0, n_pad - n))     # single cheap pad (< L elems)
    idx2d = flat.reshape(n_rows, L)

    # Rows per grid step: ~tile_elems elements per step, multiple of 8 sublanes.
    tm_default = max(8, (tile_elems // L) // 8 * 8)
    tm = n_rows if n_rows <= tm_default else tm_default
    grid = (pl.cdiv(n_rows, tm),)                # partial last block is fine

    out_t = pl.pallas_call(
        _embedding_kernel,
        out_shape=jax.ShapeDtypeStruct((d, n_rows, L), table.dtype),
        grid=grid,
        in_specs=[
            # Tiny (2, 3) table: whole thing in SMEM, read as scalars.
            pl.BlockSpec(memory_space=pltpu.MemorySpace.SMEM),
            # Lane-dense 2-D index tiles.
            pl.BlockSpec((tm, L), lambda i: (i, 0)),
        ],
        out_specs=pl.BlockSpec((d, tm, L), lambda i: (0, i, 0)),
        compiler_params=pltpu.CompilerParams(
            dimension_semantics=("parallel",),   # megacore-shardable on v7x
        ),
    )(table, idx2d)

    # Slice valid elements first, then transpose (layout plumbing only).
    out = out_t.reshape(d, n_pad)[:, :n].T       # (N, D)
    return out.reshape(*orig_shape, d)

# TODO(synk): if the vocabulary grows beyond a few hundred rows, switch to a
# scalar-prefetch row gather (PrefetchScalarGridSpec + pl.Element table spec).


if __name__ == "__main__":
    key = jax.random.PRNGKey(0)
    k_w, k_x = jax.random.split(key)

    # nn.Embedding(2, 3) weight: (num_embeddings=2, embedding_dim=3), N(0,1) init.
    table = jax.random.normal(k_w, (2, 3), dtype=jnp.float32)

    # Small index input consistent with the module: values in {0, 1}.
    x = jax.random.randint(k_x, (2, 8), minval=0, maxval=2, dtype=jnp.int32)

    out = jax.block_until_ready(embedding_forward(x, table))

    # Reference in plain JAX: table[x] * sqrt(3)
    ref = table[x] * math.sqrt(3.0)
    assert out.shape == (2, 8, 3), out.shape
    assert jnp.allclose(out, ref, atol=1e-6, rtol=1e-6), "mismatch vs reference"

    print("KERNEL_OK")
</pallas_src>

<mosaic_0001>
module attributes {stable_mosaic.version = 11 : i64} {
  func.func @_embedding_kernel(%arg0: i32, %arg1: memref<2x3xf32, #tpu.memory_space<smem>>, %arg2: memref<1x512xi32, #tpu.memory_space<vmem>>, %arg3: memref<3x1x512xf32, #tpu.memory_space<vmem>>) attributes {dimension_semantics = [#tpu.dimension_semantics<parallel>], iteration_bounds = array<i64: 1>, scalar_prefetch = 0 : i64, scratch_operands = 0 : i64, tpu.core_type = #tpu.core_type<tc>, window_params = [{transform_indices = @transform_0, window_bounds = array<i64: 2, 3>}, {transform_indices = @transform_1, window_bounds = array<i64: 1, 512>}, {transform_indices = @transform_2, window_bounds = array<i64: 3, 1, 512>}]} {
    %c0 = arith.constant 0 : index
    %c0_0 = arith.constant 0 : index
    %0 = vector.load %arg2[%c0, %c0_0] : memref<1x512xi32, #tpu.memory_space<vmem>>, vector<1x512xi32>
    %c0_i32 = arith.constant 0 : i32
    %1 = vector.broadcast %c0_i32 : i32 to vector<1x512xi32>
    %2 = arith.cmpi eq, %0, %1 : vector<1x512xi32>
    %c0_1 = arith.constant 0 : index
    %c0_2 = arith.constant 0 : index
    %3 = memref.load %arg1[%c0_1, %c0_2] : memref<2x3xf32, #tpu.memory_space<smem>>
    %cst = arith.constant 1.73205078 : f32
    %4 = arith.mulf %3, %cst : f32
    %c1 = arith.constant 1 : index
    %c0_3 = arith.constant 0 : index
    %5 = memref.load %arg1[%c1, %c0_3] : memref<2x3xf32, #tpu.memory_space<smem>>
    %cst_4 = arith.constant 1.73205078 : f32
    %6 = arith.mulf %5, %cst_4 : f32
    %7 = vector.broadcast %4 : f32 to vector<1x512xf32>
    %8 = vector.broadcast %6 : f32 to vector<1x512xf32>
    %9 = arith.select %2, %7, %8 : vector<1x512xi1>, vector<1x512xf32>
    %c0_5 = arith.constant 0 : index
    %c0_6 = arith.constant 0 : index
    %c0_7 = arith.constant 0 : index
    %10 = vector.load %arg3[%c0_5, %c0_6, %c0_7] : memref<3x1x512xf32, #tpu.memory_space<vmem>>, vector<1x1x512xf32>
    %11 = vector.shape_cast %10 : vector<1x1x512xf32> to vector<1x512xf32>
    %12 = vector.shape_cast %9 : vector<1x512xf32> to vector<1x1x512xf32>
    tpu.vector_store %arg3[%c0_5, %c0_6, %c0_7], %12 {strides = array<i32>} : memref<3x1x512xf32, #tpu.memory_space<vmem>>, vector<1x1x512xf32>,
    %c0_8 = arith.constant 0 : index
    %c1_9 = arith.constant 1 : index
    %13 = memref.load %arg1[%c0_8, %c1_9] : memref<2x3xf32, #tpu.memory_space<smem>>
    %cst_10 = arith.constant 1.73205078 : f32
    %14 = arith.mulf %13, %cst_10 : f32
    %c1_11 = arith.constant 1 : index
    %c1_12 = arith.constant 1 : index
    %15 = memref.load %arg1[%c1_11, %c1_12] : memref<2x3xf32, #tpu.memory_space<smem>>
    %cst_13 = arith.constant 1.73205078 : f32
    %16 = arith.mulf %15, %cst_13 : f32
    %17 = vector.broadcast %14 : f32 to vector<1x512xf32>
    %18 = vector.broadcast %16 : f32 to vector<1x512xf32>
    %19 = arith.select %2, %17, %18 : vector<1x512xi1>, vector<1x512xf32>
    %c1_14 = arith.constant 1 : index
    %c0_15 = arith.constant 0 : index
    %c0_16 = arith.constant 0 : index
    %20 = vector.load %arg3[%c1_14, %c0_15, %c0_16] : memref<3x1x512xf32, #tpu.memory_space<vmem>>, vector<1x1x512xf32>
    %21 = vector.shape_cast %20 : vector<1x1x512xf32> to vector<1x512xf32>
    %22 = vector.shape_cast %19 : vector<1x512xf32> to vector<1x1x512xf32>
    tpu.vector_store %arg3[%c1_14, %c0_15, %c0_16], %22 {strides = array<i32>} : memref<3x1x512xf32, #tpu.memory_space<vmem>>, vector<1x1x512xf32>,
    %c0_17 = arith.constant 0 : index
    %c2 = arith.constant 2 : index
    %23 = memref.load %arg1[%c0_17, %c2] : memref<2x3xf32, #tpu.memory_space<smem>>
    %cst_18 = arith.constant 1.73205078 : f32
    %24 = arith.mulf %23, %cst_18 : f32
    %c1_19 = arith.constant 1 : index
    %c2_20 = arith.constant 2 : index
    %25 = memref.load %arg1[%c1_19, %c2_20] : memref<2x3xf32, #tpu.memory_space<smem>>
    %cst_21 = arith.constant 1.73205078 : f32
    %26 = arith.mulf %25, %cst_21 : f32
    %27 = vector.broadcast %24 : f32 to vector<1x512xf32>
    %28 = vector.broadcast %26 : f32 to vector<1x512xf32>
    %29 = arith.select %2, %27, %28 : vector<1x512xi1>, vector<1x512xf32>
    %c2_22 = arith.constant 2 : index
    %c0_23 = arith.constant 0 : index
    %c0_24 = arith.constant 0 : index
    %30 = vector.load %arg3[%c2_22, %c0_23, %c0_24] : memref<3x1x512xf32, #tpu.memory_space<vmem>>, vector<1x1x512xf32>
    %31 = vector.shape_cast %30 : vector<1x1x512xf32> to vector<1x512xf32>
    %32 = vector.shape_cast %29 : vector<1x512xf32> to vector<1x1x512xf32>
    tpu.vector_store %arg3[%c2_22, %c0_23, %c0_24], %32 {strides = array<i32>} : memref<3x1x512xf32, #tpu.memory_space<vmem>>, vector<1x1x512xf32>,
    return
  }
  func.func @transform_0(%arg0: i32) -> (i32, i32) {
    %c0_i32 = arith.constant 0 : i32
    %c0_i32_0 = arith.constant 0 : i32
    %c0_i32_1 = arith.constant 0 : i32
    return %c0_i32, %c0_i32_0 : i32, i32
  }
  func.func @transform_1(%arg0: i32) -> (i32, i32) {
    %c0_i32 = arith.constant 0 : i32
    %c0_i32_0 = arith.constant 0 : i32
    return %arg0, %c0_i32 : i32, i32
  }
  func.func @transform_2(%arg0: i32) -> (i32, i32, i32) {
    %c0_i32 = arith.constant 0 : i32
    %c0_i32_0 = arith.constant 0 : i32
    %c0_i32_1 = arith.constant 0 : i32
    return %c0_i32, %arg0, %c0_i32_0 : i32, i32, i32
  }
}

</mosaic_0001>

<llo_original>
// kernel: tpu_custom_call.1
$region0: #{tpu_custom_call.1}
  #allocation0 [shape = 'u32[]', space=smem, size = 0x4, offset = 0x4, fixed_abs, tag = 'smem constant byte address 0x4 - core index']
  #allocation1 [shape = 'u32[144,128]{1,0:T(1,128)}', space=vmem, size = 0x12000, scoped, tag = 'internal scratch']
  %s0 = inlined_call_operand.hbm [shape: f32[2,3], index: 0, kind: input, shape index: {}]
  %s1 = inlined_call_operand.hbm [shape: s32[1,512], index: 1, kind: input, shape index: {}]
  %s2 = inlined_call_operand.hbm [shape: f32[3,1,512], index: 2, kind: output, shape index: {}]
  %s3 = sld [smem:[#allocation0]]
  $region26: #{tpu_custom_call.1} parent=0
    _
  %s5 = ssub.s32 1, %s3
  %s6 = scalar_select 0, %s5, %s3
  $region1: #{tpu_custom_call.1} parent=0
    #allocation2 [shape = 'u8[1024]{0}', space=smem, size = 0x400, scoped, tag = 'input window, operand 0, single buffered']
    #allocation3 [shape = 's32[1]{0}', space=sflag, size = 0x4, scoped, tag = 'scoped memory for tpu_custom_call.1']
    #allocation4 [shape = 's32[1]{0}', space=sflag, size = 0x4, scoped, tag = 'scoped memory for tpu_custom_call.1']
    #allocation5 [shape = 's32[1]{0}', space=sflag, size = 0x4, scoped, tag = 'scoped memory for tpu_custom_call.1']
    #allocation6 [shape = 'u8[2048]{0}', space=vmem, size = 0x800, scoped, tag = 'input window, operand 1, single buffered']
    #allocation7 [shape = 'u8[6144]{0}', space=vmem, size = 0x1800, scoped, tag = 'output window, operand 0, single buffered']
    %7 = vsyncpa [#allocation5], 0
    %8 = vsyncpa [#allocation3], 0
    %9 = vsyncpa [#allocation4], 0
    // Predicated region
    $region2: #{tpu_custom_call.1} parent=1 // pred_check
      _
    $region3: #{tpu_custom_call.1} parent=1 // pred_check_branch
      %11 = sbr.rel (0) target = $region5
    $region4: #{tpu_custom_call.1} parent=1 // pred_region
      %s13 = ssub.s32 32, 32
      %14 = vsyncadd [#allocation5], %s13
      %17 = dma.hbm_to_smem %s0, 32, [#allocation2], [#allocation5]
    $region5: #{tpu_custom_call.1} parent=1 // pred_fallthru
      _
    // Predicated region
    $region6: #{tpu_custom_call.1} parent=1 // pred_check
      _
    $region7: #{tpu_custom_call.1} parent=1 // pred_check_branch
      %19 = sbr.rel (0) target = $region9
    $region8: #{tpu_custom_call.1} parent=1 // pred_region
      %s21 = ssub.s32 64, 64
      %22 = vsyncadd [#allocation3], %s21
      %s24 = sshll.u32 [#allocation6], 4
      %s25 = int_to_ptr.vmem [resolvable:$true] %s24
      %27 = dma.hbm_to_vmem [thread:$0]  %s1, 64, %s25, [#allocation3]
    $region9: #{tpu_custom_call.1} parent=1 // pred_fallthru
      _
    // Predicated region
    $region10: #{tpu_custom_call.1} parent=1 // pred_check
      _
    $region11: #{tpu_custom_call.1} parent=1 // pred_check_branch
      %29 = sbr.rel (0) target = $region13
    $region12: #{tpu_custom_call.1} parent=1 // pred_region
      %30 = dma.done [#allocation5], 32
    $region13: #{tpu_custom_call.1} parent=1 // pred_fallthru
      _
    // Predicated region
    $region14: #{tpu_custom_call.1} parent=1 // pred_check
      _
    $region15: #{tpu_custom_call.1} parent=1 // pred_check_branch
      %32 = sbr.rel (0) target = $region17
    $region16: #{tpu_custom_call.1} parent=1 // pred_region
      %33 = dma.done [#allocation3], 64
    $region17: #{tpu_custom_call.1} parent=1 // pred_fallthru
      _
    %34 = sfence
    %v35 = vld [vmem:[#allocation6] sm:$0xf]
    %vm36 = vcmp.eq.s32.totalorder %v35, 0
    %s37 = sld [smem:[#allocation2]]
    %s38 = smul.f32 %s37, 1.7320508
    %s39 = sld [smem:[#allocation2 + $0x80]]
    %s40 = smul.f32 %s39, 1.7320508
    %v41 = vstv %s38
    %v42 = vstv %s40
    %v43 = vsel %vm36, %v41, %v42
    %v44 = vlaneseq
    %vm45 = vcmp.ge.s32.totalorder %v44, 0
    %vm46 = vcmp.lt.s32.totalorder %v44, 512
    %vm47 = vmand %vm45, %vm46
    %48 = vst.msk [vmem:[#allocation7] sm:$0xf] %vm47, %v43
    %s49 = sld [smem:[#allocation2 + $0x1]]
    %s50 = smul.f32 %s49, 1.7320508
    %s51 = sld [smem:[#allocation2 + $0x81]]
    %s52 = smul.f32 %s51, 1.7320508
    %v53 = vstv %s50
    %v54 = vstv %s52
    %v55 = vsel %vm36, %v53, %v54
    %s56 = scalar_lea.vmem [#allocation7], 4
    %57 = vst.msk [vmem:[%s56] sm:$0xf] %vm47, %v55
    %s58 = sld [smem:[#allocation2 + $0x2]]
    %s59 = smul.f32 %s58, 1.7320508
    %s60 = sld [smem:[#allocation2 + $0x82]]
    %s61 = smul.f32 %s60, 1.7320508
    %v62 = vstv %s59
    %v63 = vstv %s61
    %v64 = vsel %vm36, %v62, %v63
    %s65 = scalar_lea.vmem [#allocation7], 8
    %66 = vst.msk [vmem:[%s65] sm:$0xf] %vm47, %v64
    // Predicated region
    $region18: #{tpu_custom_call.1} parent=1 // pred_check
      _
    $region19: #{tpu_custom_call.1} parent=1 // pred_check_branch
      %68 = sbr.rel (0) target = $region21
    $region20: #{tpu_custom_call.1} parent=1 // pred_region
      %s70 = ssub.s32 192, 192
      %71 = vsyncadd [#allocation4], %s70
      %s72 = sshll.u32 [#allocation7], 4
      %s73 = int_to_ptr.vmem [resolvable:$true] %s72
      %78 = dma.vmem_to_hbm [thread:$0]  %s73, 192, %s2, [#allocation4], 64, 64, 4
    $region21: #{tpu_custom_call.1} parent=1 // pred_fallthru
      _
    // Predicated region
    $region22: #{tpu_custom_call.1} parent=1 // pred_check
      _
    $region23: #{tpu_custom_call.1} parent=1 // pred_check_branch
      %80 = sbr.rel (0) target = $region25
    $region24: #{tpu_custom_call.1} parent=1 // pred_region
      %81 = dma.done [#allocation4], 192
    $region25: #{tpu_custom_call.1} parent=1 // pred_fallthru
      _
    %82 = vsyncpa [#allocation3], 1
    %83 = vsyncpa [#allocation4], 1
    %84 = vsyncpa [#allocation5], 1

</llo_original>
